<compile_context>
chip_gen: v7x
topology: tpu7x:2x2x1
jax: 0.10.0
libtpu: 0.0.40
codegen_flags: <defaults>
</compile_context>

<pallas_src>
import functools

import jax
import jax.numpy as jnp
from jax.experimental import pallas as pl
from jax.experimental.pallas import tpu as pltpu

LANE = 128       # TPU lane width
CP = 128         # padded channel width (all channel dims in this model are <= 128)
ROW_ALIGN = 32   # row alignment (int8 adjacency sublane packing is 32)


# ---------------------------------------------------------------------------
# helpers
# ---------------------------------------------------------------------------
def _cdiv(a, b):
    return -(-a // b)


def _round_up(n, m):
    return _cdiv(n, m) * m


def _pad2d(a, rows, cols):
    r, c = a.shape
    return jnp.pad(a, ((0, rows - r), (0, cols - c)))


def _fit_rows(a, rows):
    r = a.shape[0]
    if r == rows:
        return a
    if r < rows:
        return jnp.pad(a, ((0, rows - r), (0, 0)))
    return a[:rows]


def _tile_caps():
    """Generation-aware tile caps + scoped-VMEM request."""
    try:
        vmem = int(pltpu.get_tpu_info().vmem_capacity_bytes)
    except Exception:                      # CPU interpret / old jax: be conservative
        vmem = 64 * 1024 * 1024
    if vmem >= 96 * 1024 * 1024:           # v5e / v6e: 128 MiB physical VMEM
        return 1024, 8192, 96 * 1024 * 1024
    return 512, 4096, 40 * 1024 * 1024     # v7x (64 MiB) / unknown


def _plan_tiles(n_tgt, n_src, tm_cap, tk_cap):
    # >=2 row tiles for non-tiny frontiers so dimension_semantics=("parallel",...)
    # can shard the row axis across TensorCores (v7x has 2 TCs/chip).
    nm = max(_cdiv(n_tgt, tm_cap), 2 if n_tgt >= 256 else 1)
    tm = _round_up(_cdiv(n_tgt, nm), ROW_ALIGN)
    nt_p = nm * tm
    # K (source) tiling: lane-aligned, total padding bounded by < one K tile.
    nk = _cdiv(n_src, tk_cap)
    tk = _round_up(_cdiv(n_src, nk), LANE)
    ns_p = nk * tk
    return tm, nt_p, tk, ns_p


# ---------------------------------------------------------------------------
# Pallas kernel: one tiled SAGEConv layer (+ optional log_softmax epilogue)
# ---------------------------------------------------------------------------
def _sage_layer_kernel(a_ref, inv_ref, xs_ref, xt_ref, wl_ref, wr_ref, b_ref,
                       *refs, apply_relu, fuse_log_softmax, n_rows, n_cols, tm):
    """grid = (row_tiles, k_tiles):
         acc += A_int8_tile.bf16 @ x_src_tile            (bf16 MXU, f32 acc)
       epilogue on last k:
         agg = acc * (1/deg)            (f32 mean normalization)
         h   = agg@W_l + x_tgt@W_r + b  (+relu)
         optionally log_softmax(h) with padded lanes masked."""
    if fuse_log_softmax:
        o_ref, ls_ref, acc_ref = refs
    else:
        o_ref, acc_ref = refs
        ls_ref = None

    # Grid position/extent read at top level (NOT inside pl.when) so both the
    # TPU lowering and the interpret path handle them.
    i = pl.program_id(0)
    k = pl.program_id(1)
    nk = pl.num_programs(1)

    @pl.when(k == 0)
    def _():
        acc_ref[...] = jnp.zeros_like(acc_ref)

    acc_ref[...] += jnp.dot(a_ref[...].astype(jnp.bfloat16), xs_ref[...],
                            preferred_element_type=jnp.float32)

    @pl.when(k == nk - 1)
    def _():
        # mean aggregation: f32 row scale, then one bf16 cast for the MXU
        agg = (acc_ref[...] * inv_ref[...]).astype(jnp.bfloat16)
        h = jnp.dot(agg, wl_ref[...], preferred_element_type=jnp.float32)
        h = h + jnp.dot(xt_ref[...], wr_ref[...], preferred_element_type=jnp.float32)
        h = h + b_ref[...]
        if apply_relu:
            h = jnp.maximum(h, 0.0)

        # zero padded target rows so padding composes cleanly across layers
        row_ids = i * tm + jax.lax.broadcasted_iota(jnp.int32, h.shape, 0)
        row_ok = row_ids < n_rows
        h = jnp.where(row_ok, h, 0.0)
        o_ref[...] = h.astype(o_ref.dtype)

        if fuse_log_softmax:
            # padded lanes masked out of the normalization; fully-padded rows
            # produce uniform log-probs before being masked to 0 (benign, no NaN)
            col_ok = jax.lax.broadcasted_iota(jnp.int32, h.shape, 1) < n_cols
            hm = jnp.where(col_ok, h, -jnp.inf)
            m = jnp.max(hm, axis=-1, keepdims=True)
            s = hm - m
            lse = jnp.log(jnp.sum(jnp.exp(s), axis=-1, keepdims=True))
            ls_ref[...] = jnp.where(row_ok & col_ok, s - lse, 0.0).astype(ls_ref.dtype)


def sage_conv_layer(A_i8, inv_p, x_src_p, x_tgt_p, wl_p, wr_p, b_p, *,
                    n_tgt, n_cols, apply_relu, fuse_log_softmax, tm, tk,
                    vmem_limit_bytes):
    nt_p, ns_p = A_i8.shape
    cp = x_src_p.shape[1]
    grid = (nt_p // tm, ns_p // tk)
    n_row_tiles = grid[0]

    kernel = functools.partial(
        _sage_layer_kernel, apply_relu=apply_relu,
        fuse_log_softmax=fuse_log_softmax, n_rows=n_tgt, n_cols=n_cols, tm=tm)

    in_specs = [
        pl.BlockSpec((tm, tk), lambda i, k: (i, k)),    # A tile (int8 0/1)
        pl.BlockSpec((tm, 1), lambda i, k: (i, 0)),     # 1/deg (f32)
        pl.BlockSpec((tk, cp), lambda i, k: (k, 0)),    # x_src tile (bf16)
        pl.BlockSpec((tm, cp), lambda i, k: (i, 0)),    # x_target tile (bf16)
        pl.BlockSpec((cp, cp), lambda i, k: (0, 0)),    # W_l (bf16)
        pl.BlockSpec((cp, cp), lambda i, k: (0, 0)),    # W_r (bf16)
        pl.BlockSpec((1, cp), lambda i, k: (0, 0)),     # bias (f32)
    ]
    if fuse_log_softmax:
        out_shape = (jax.ShapeDtypeStruct((nt_p, cp), jnp.float32),
                     jax.ShapeDtypeStruct((nt_p, cp), jnp.float32))
        out_specs = (pl.BlockSpec((tm, cp), lambda i, k: (i, 0)),
                     pl.BlockSpec((tm, cp), lambda i, k: (i, 0)))
        out_bytes = 2 * nt_p * cp * 4
    else:
        # intermediate activations stay bf16 (feed the next layer's MXU directly)
        out_shape = jax.ShapeDtypeStruct((nt_p, cp), jnp.bfloat16)
        out_specs = pl.BlockSpec((tm, cp), lambda i, k: (i, 0))
        out_bytes = nt_p * cp * 2

    cost = pl.CostEstimate(
        flops=2 * nt_p * ns_p * cp + 2 * nt_p * cp * (2 * cp),
        transcendentals=(nt_p * cp) if fuse_log_softmax else 0,
        bytes_accessed=(A_i8.size                          # int8, streamed once
                        + n_row_tiles * x_src_p.size * 2   # re-streamed per row tile
                        + x_tgt_p.size * 2 + inv_p.size * 4
                        + (wl_p.size + wr_p.size) * 2 + b_p.size * 4
                        + out_bytes))

    return pl.pallas_call(
        kernel,
        out_shape=out_shape,
        grid=grid,
        in_specs=in_specs,
        out_specs=out_specs,
        scratch_shapes=[pltpu.VMEM((tm, cp), jnp.float32)],
        compiler_params=pltpu.CompilerParams(
            dimension_semantics=("parallel", "arbitrary"),
            vmem_limit_bytes=vmem_limit_bytes),
        cost_estimate=cost,
    )(A_i8, inv_p, x_src_p, x_tgt_p, wl_p, wr_p, b_p)


# ---------------------------------------------------------------------------
# Fused small-frontier kernel: all layers in one pallas_call, activations in VMEM
# ---------------------------------------------------------------------------
def _sage_fused_kernel(x0_ref, *refs, num_layers, n_tgts, n_cols_last):
    layer_refs = refs[:5 * num_layers]
    ls_ref, xf_ref, out_ref = refs[5 * num_layers:]
    x = x0_ref[...]                                      # bf16, stays in VMEM
    for li in range(num_layers):
        a_ref, inv_ref, wl_ref, wr_ref, b_ref = layer_refs[5 * li: 5 * li + 5]
        last = (li == num_layers - 1)
        if last:
            out_ref[...] = x.astype(jnp.float32)         # "out" = input of last conv
        nt_p = a_ref.shape[0]
        agg = jnp.dot(a_ref[...].astype(jnp.bfloat16), x,
                      preferred_element_type=jnp.float32) * inv_ref[...]
        xt = x[:nt_p]
        h = jnp.dot(agg.astype(jnp.bfloat16), wl_ref[...],
                    preferred_element_type=jnp.float32)
        h = h + jnp.dot(xt, wr_ref[...], preferred_element_type=jnp.float32)
        h = h + b_ref[...]
        row_ok = jax.lax.broadcasted_iota(jnp.int32, h.shape, 0) < n_tgts[li]
        if not last:
            h = jnp.maximum(h, 0.0)                      # relu
            # F.dropout(p=0.5, training=False) -> identity (eval mode)
            x = jnp.where(row_ok, h, 0.0).astype(jnp.bfloat16)
        else:
            h = jnp.where(row_ok, h, 0.0)
            xf_ref[...] = h
            col_ok = jax.lax.broadcasted_iota(jnp.int32, h.shape, 1) < n_cols_last
            hm = jnp.where(col_ok, h, -jnp.inf)
            m = jnp.max(hm, axis=-1, keepdims=True)
            s = hm - m
            lse = jnp.log(jnp.sum(jnp.exp(s), axis=-1, keepdims=True))
            # padded rows are uniform pre-mask (benign); masked to 0
            ls_ref[...] = jnp.where(row_ok & col_ok, s - lse, 0.0)


def sage_forward_fused(x, graph, params, num_layers):
    """Single pallas_call; activations never round-trip to HBM between layers.
    Only valid when all per-layer operands fit VMEM (small sampled frontiers)."""
    n0_p = graph[0]["cols_p"]
    xp = _pad2d(x, n0_p, CP).astype(jnp.bfloat16)

    operands = [xp]
    in_specs = [pl.BlockSpec((n0_p, CP), lambda i: (0, 0))]
    flops = 0
    bytes_accessed = xp.size * 2
    for li in range(num_layers):
        L = graph[li]
        wl_p, wr_p, b_p, _ = params[li]
        operands += [L["A"], L["inv"], wl_p, wr_p, b_p]
        in_specs += [
            pl.BlockSpec(L["A"].shape, lambda i: (0, 0)),
            pl.BlockSpec(L["inv"].shape, lambda i: (0, 0)),
            pl.BlockSpec((CP, CP), lambda i: (0, 0)),
            pl.BlockSpec((CP, CP), lambda i: (0, 0)),
            pl.BlockSpec((1, CP), lambda i: (0, 0)),
        ]
        flops += 2 * L["rows_p"] * L["cols_p"] * CP + 2 * L["rows_p"] * CP * (2 * CP)
        bytes_accessed += (L["A"].size + L["inv"].size * 4
                           + (wl_p.size + wr_p.size) * 2 + b_p.size * 4)

    n_last_p = graph[-1]["rows_p"]
    n_pre_p = graph[-1]["cols_p"]
    out_shape = (jax.ShapeDtypeStruct((n_last_p, CP), jnp.float32),
                 jax.ShapeDtypeStruct((n_last_p, CP), jnp.float32),
                 jax.ShapeDtypeStruct((n_pre_p, CP), jnp.float32))
    out_specs = (pl.BlockSpec((n_last_p, CP), lambda i: (0, 0)),
                 pl.BlockSpec((n_last_p, CP), lambda i: (0, 0)),
                 pl.BlockSpec((n_pre_p, CP), lambda i: (0, 0)))
    bytes_accessed += (2 * n_last_p + n_pre_p) * CP * 4

    kernel = functools.partial(
        _sage_fused_kernel, num_layers=num_layers,
        n_tgts=tuple(L["n_tgt"] for L in graph),
        n_cols_last=params[-1][3])

    ls_p, xf_p, out_p = pl.pallas_call(
        kernel,
        out_shape=out_shape,
        grid=(1,),
        in_specs=in_specs,
        out_specs=out_specs,
        compiler_params=pltpu.CompilerParams(dimension_semantics=("arbitrary",)),
        cost_estimate=pl.CostEstimate(flops=flops, transcendentals=n_last_p * CP,
                                      bytes_accessed=bytes_accessed),
    )(*operands)

    n_last = graph[-1]["n_tgt"]
    cout = params[-1][3]
    n_pre = graph[-1]["n_src"]
    hidden = params[-2][3] if num_layers >= 2 else x.shape[1]
    return ls_p[:n_last, :cout], xf_p[:n_last, :cout], out_p[:n_pre, :hidden]


# ---------------------------------------------------------------------------
# One-time graph / parameter preparation (outside the forward hot path)
# ---------------------------------------------------------------------------
def prepare_adjacency(A_bin, rows_p, cols_p):
    """A_bin: (n_tgt, n_src) 0/1 adjacency (float). Returns padded int8 A and
    per-target-row f32 1/deg (mean normalization applied in-kernel in f32)."""
    deg = jnp.sum(A_bin, axis=1, keepdims=True)
    inv = 1.0 / jnp.maximum(deg, 1.0)          # isolated targets aggregate to 0
    A_p = _pad2d(A_bin, rows_p, cols_p).astype(jnp.int8)
    inv_p = _pad2d(inv, rows_p, 1).astype(jnp.float32)
    return A_p, inv_p


def prepare_graph_tiled(adjs_raw):
    tm_cap, tk_cap, vmem_limit = _tile_caps()
    layers = []
    for A_bin, (n_src, n_tgt) in adjs_raw:
        tm, nt_p, tk, ns_p = _plan_tiles(n_tgt, n_src, tm_cap, tk_cap)
        A_p, inv_p = prepare_adjacency(A_bin, nt_p, ns_p)
        layers.append(dict(A=A_p, inv=inv_p, n_src=n_src, n_tgt=n_tgt,
                           tm=tm, tk=tk, nt_p=nt_p, ns_p=ns_p))
    return dict(layers=layers, vmem_limit_bytes=vmem_limit)


def prepare_graph_fused(adjs_raw):
    layers = []
    for A_bin, (n_src, n_tgt) in adjs_raw:
        rows_p = _round_up(n_tgt, LANE)
        cols_p = _round_up(n_src, LANE)
        A_p, inv_p = prepare_adjacency(A_bin, rows_p, cols_p)
        layers.append(dict(A=A_p, inv=inv_p, n_src=n_src, n_tgt=n_tgt,
                           rows_p=rows_p, cols_p=cols_p))
    return layers


def prepare_sage_params(w_l, b_l, w_r):
    """Pad to lane width, cast bf16. W_l / W_r stay separate (two-dot epilogue)."""
    cin, cout = w_l.shape
    assert cin <= CP and cout <= CP, "toy model assumes channel dims <= 128"
    wl_p = _pad2d(w_l, CP, CP).astype(jnp.bfloat16)
    wr_p = _pad2d(w_r, CP, CP).astype(jnp.bfloat16)
    b_p = _pad2d(b_l, 1, CP).astype(jnp.float32)
    return wl_p, wr_p, b_p, cout


# ---------------------------------------------------------------------------
# Full forward pass (eval mode) - general tiled path
# ---------------------------------------------------------------------------
def sage_forward_tiled(x, graph, params, num_layers):
    layers = graph["layers"]
    vmem_limit = graph["vmem_limit_bytes"]
    xp = _pad2d(x, x.shape[0], CP).astype(jnp.bfloat16)
    prev_cout = x.shape[1]
    out_p = out_rows = out_cols = None
    log_probs = x_final = None

    for i in range(num_layers):
        L = layers[i]
        wl_p, wr_p, b_p, cout = params[i]
        last = (i == num_layers - 1)
        if last:
            out_p, out_rows, out_cols = xp, L["n_src"], prev_cout

        x_src_p = _fit_rows(xp, L["ns_p"])
        # targets are the leading rows of x; rows >= n_tgt are masked in-kernel
        x_tgt_p = _fit_rows(xp, L["nt_p"])

        if last:
            xf_p, ls_p = sage_conv_layer(
                L["A"], L["inv"], x_src_p, x_tgt_p, wl_p, wr_p, b_p,
                n_tgt=L["n_tgt"], n_cols=cout, apply_relu=False,
                fuse_log_softmax=True, tm=L["tm"], tk=L["tk"],
                vmem_limit_bytes=vmem_limit)
            x_final = xf_p[:L["n_tgt"], :cout]
            log_probs = ls_p[:L["n_tgt"], :cout]
        else:
            xp = sage_conv_layer(
                L["A"], L["inv"], x_src_p, x_tgt_p, wl_p, wr_p, b_p,
                n_tgt=L["n_tgt"], n_cols=cout, apply_relu=True,
                fuse_log_softmax=False, tm=L["tm"], tk=L["tk"],
                vmem_limit_bytes=vmem_limit)
            # F.dropout(p=0.5, training=False) -> identity (eval mode)
            prev_cout = cout

    out = out_p[:out_rows, :out_cols].astype(jnp.float32)
    return log_probs, x_final, out


# ---------------------------------------------------------------------------
# Deterministic parameter / input construction
# ---------------------------------------------------------------------------
def init_linear(key, fan_in, fan_out, bias):
    kw, kb = jax.random.split(key)
    bound = 1.0 / float(fan_in) ** 0.5
    w = jax.random.uniform(kw, (fan_in, fan_out), jnp.float32, -bound, bound)
    b = (jax.random.uniform(kb, (1, fan_out), jnp.float32, -bound, bound)
         if bias else jnp.zeros((1, fan_out), jnp.float32))
    return w, b


if __name__ == "__main__":
    key = jax.random.PRNGKey(0)

    in_channels, hidden_channels, out_channels, num_layers = 16, 32, 8, 3
    node_counts = [64, 32, 16, 8]    # neighbor-sampled frontier sizes per hop

    keys = jax.random.split(key, 16)

    dims = [in_channels] + [hidden_channels] * (num_layers - 1)
    outs = [hidden_channels] * (num_layers - 1) + [out_channels]
    params = []
    for i in range(num_layers):
        wl, bl = init_linear(keys[2 * i], dims[i], outs[i], bias=True)
        wr, _ = init_linear(keys[2 * i + 1], dims[i], outs[i], bias=False)
        params.append(prepare_sage_params(wl, bl, wr))

    adjs_raw = []
    for i in range(num_layers):
        n_src, n_tgt = node_counts[i], node_counts[i + 1]
        A_bin = jax.random.bernoulli(keys[8 + i], 0.35, (n_tgt, n_src)).astype(jnp.float32)
        adjs_raw.append((A_bin, (n_src, n_tgt)))

    x = jax.random.normal(keys[12], (node_counts[0], in_channels), jnp.float32)

    # general tiled path (per-layer kernels)
    graph_t = prepare_graph_tiled(adjs_raw)
    lp_t, xf_t, out_t = sage_forward_tiled(x, graph_t, params, num_layers)

    # fused small-frontier path (single kernel, activations stay in VMEM)
    graph_f = prepare_graph_fused(adjs_raw)
    lp_f, xf_f, out_f = sage_forward_fused(x, graph_f, params, num_layers)

    jax.block_until_ready((lp_t, xf_t, out_t, lp_f, xf_f, out_f))

    assert lp_t.shape == (node_counts[-1], out_channels)
    assert xf_t.shape == (node_counts[-1], out_channels)
    assert out_t.shape == (node_counts[-2], hidden_channels)
    assert lp_f.shape == lp_t.shape and xf_f.shape == xf_t.shape and out_f.shape == out_t.shape
    # log_softmax rows must sum to 1 in prob space (softmax itself is f32)
    assert jnp.allclose(jnp.sum(jnp.exp(lp_t), axis=-1), 1.0, atol=1e-3)
    assert jnp.allclose(jnp.sum(jnp.exp(lp_f), axis=-1), 1.0, atol=1e-3)
    # both execution paths compute the same math (bf16 MXU, f32 accum/normalize)
    assert jnp.allclose(lp_t, lp_f, atol=2e-2, rtol=2e-2)
    assert jnp.allclose(xf_t, xf_f, atol=2e-2, rtol=2e-2)
    assert jnp.allclose(out_t, out_f, atol=2e-2, rtol=2e-2)

    print("KERNEL_OK")
</pallas_src>

<mosaic_0001>
module attributes {stable_mosaic.version = 11 : i64} {
  func.func @_sage_layer_kernel(%arg0: i32, %arg1: i32, %arg2: memref<32x128xi8, #tpu.memory_space<vmem>>, %arg3: memref<32x1xf32, #tpu.memory_space<vmem>>, %arg4: memref<128x128xbf16, #tpu.memory_space<vmem>>, %arg5: memref<32x128xbf16, #tpu.memory_space<vmem>>, %arg6: memref<128x128xbf16, #tpu.memory_space<vmem>>, %arg7: memref<128x128xbf16, #tpu.memory_space<vmem>>, %arg8: memref<1x128xf32, #tpu.memory_space<vmem>>, %arg9: memref<32x128xbf16, #tpu.memory_space<vmem>>, %arg10: memref<32x128xf32, #tpu.memory_space<vmem>>) attributes {dimension_semantics = [#tpu.dimension_semantics<parallel>, #tpu.dimension_semantics<arbitrary>], iteration_bounds = array<i64: 1, 1>, scalar_prefetch = 0 : i64, scratch_operands = 1 : i64, tpu.core_type = #tpu.core_type<tc>, window_params = [{transform_indices = @transform_0, window_bounds = array<i64: 32, 128>}, {transform_indices = @transform_1, window_bounds = array<i64: 32, 1>}, {transform_indices = @transform_2, window_bounds = array<i64: 128, 128>}, {transform_indices = @transform_3, window_bounds = array<i64: 32, 128>}, {pipeline_mode = #tpu.pipeline_mode<synchronous>, transform_indices = @transform_4, window_bounds = array<i64: 128, 128>}, {pipeline_mode = #tpu.pipeline_mode<synchronous>, transform_indices = @transform_5, window_bounds = array<i64: 128, 128>}, {pipeline_mode = #tpu.pipeline_mode<synchronous>, transform_indices = @transform_6, window_bounds = array<i64: 1, 128>}, {transform_indices = @transform_7, window_bounds = array<i64: 32, 128>}]} {
    %c0_i32 = arith.constant 0 : i32
    %0 = arith.cmpi eq, %arg1, %c0_i32 : i32
    %1 = arith.extui %0 : i1 to i32
    %c0_i32_0 = arith.constant 0 : i32
    %2 = arith.cmpi ne, %1, %c0_i32_0 : i32
    scf.if %2 {
      %cst_10 = arith.constant 0.000000e+00 : f32
      %13 = vector.broadcast %cst_10 : f32 to vector<32x128xf32>
      %c0_11 = arith.constant 0 : index
      %c0_12 = arith.constant 0 : index
      %14 = vector.load %arg10[%c0_11, %c0_12] : memref<32x128xf32, #tpu.memory_space<vmem>>, vector<32x128xf32>
      tpu.vector_store %arg10[%c0_11, %c0_12], %13 {strides = array<i32>} : memref<32x128xf32, #tpu.memory_space<vmem>>, vector<32x128xf32>,
    } else {
    }
    %c0 = arith.constant 0 : index
    %c0_1 = arith.constant 0 : index
    %3 = vector.load %arg10[%c0, %c0_1] : memref<32x128xf32, #tpu.memory_space<vmem>>, vector<32x128xf32>
    %c0_2 = arith.constant 0 : index
    %c0_3 = arith.constant 0 : index
    %4 = vector.load %arg2[%c0_2, %c0_3] : memref<32x128xi8, #tpu.memory_space<vmem>>, vector<32x128xi8>
    %5 = arith.sitofp %4 : vector<32x128xi8> to vector<32x128xbf16>
    %c0_4 = arith.constant 0 : index
    %c0_5 = arith.constant 0 : index
    %6 = vector.load %arg4[%c0_4, %c0_5] : memref<128x128xbf16, #tpu.memory_space<vmem>>, vector<128x128xbf16>
    %cst = arith.constant dense<0.000000e+00> : vector<32x128xf32>
    %7 = tpu.matmul %5, %6, %cst {dimension_numbers = #tpu.dot_dimension_numbers<[1], [0], [0], [1], [0, 0, 1, 1], [], []>} : vector<32x128xbf16>, vector<128x128xbf16>, vector<32x128xf32> -> vector<32x128xf32>
    %8 = arith.addf %3, %7 : vector<32x128xf32>
    %c0_6 = arith.constant 0 : index
    %c0_7 = arith.constant 0 : index
    %9 = vector.load %arg10[%c0_6, %c0_7] : memref<32x128xf32, #tpu.memory_space<vmem>>, vector<32x128xf32>
    tpu.vector_store %arg10[%c0_6, %c0_7], %8 {strides = array<i32>} : memref<32x128xf32, #tpu.memory_space<vmem>>, vector<32x128xf32>,
    %c0_i32_8 = arith.constant 0 : i32
    %10 = arith.cmpi eq, %arg1, %c0_i32_8 : i32
    %11 = arith.extui %10 : i1 to i32
    %c0_i32_9 = arith.constant 0 : i32
    %12 = arith.cmpi ne, %11, %c0_i32_9 : i32
    scf.if %12 {
      %c0_10 = arith.constant 0 : index
      %c0_11 = arith.constant 0 : index
      %13 = vector.load %arg10[%c0_10, %c0_11] : memref<32x128xf32, #tpu.memory_space<vmem>>, vector<32x128xf32>
      %c0_12 = arith.constant 0 : index
      %c0_13 = arith.constant 0 : index
      %14 = vector.load %arg3[%c0_12, %c0_13] : memref<32x1xf32, #tpu.memory_space<vmem>>, vector<32x1xf32>
      %15 = vector.broadcast %14 : vector<32x1xf32> to vector<32x128xf32>
      %16 = arith.mulf %13, %15 : vector<32x128xf32>
      %17 = arith.truncf %16 : vector<32x128xf32> to vector<32x128xbf16>
      %c0_14 = arith.constant 0 : index
      %c0_15 = arith.constant 0 : index
      %18 = vector.load %arg6[%c0_14, %c0_15] : memref<128x128xbf16, #tpu.memory_space<vmem>>, vector<128x128xbf16>
      %cst_16 = arith.constant dense<0.000000e+00> : vector<32x128xf32>
      %19 = tpu.matmul %17, %18, %cst_16 {dimension_numbers = #tpu.dot_dimension_numbers<[1], [0], [0], [1], [0, 0, 1, 1], [], []>} : vector<32x128xbf16>, vector<128x128xbf16>, vector<32x128xf32> -> vector<32x128xf32>
      %c0_17 = arith.constant 0 : index
      %c0_18 = arith.constant 0 : index
      %20 = vector.load %arg5[%c0_17, %c0_18] : memref<32x128xbf16, #tpu.memory_space<vmem>>, vector<32x128xbf16>
      %c0_19 = arith.constant 0 : index
      %c0_20 = arith.constant 0 : index
      %21 = vector.load %arg7[%c0_19, %c0_20] : memref<128x128xbf16, #tpu.memory_space<vmem>>, vector<128x128xbf16>
      %cst_21 = arith.constant dense<0.000000e+00> : vector<32x128xf32>
      %22 = tpu.matmul %20, %21, %cst_21 {dimension_numbers = #tpu.dot_dimension_numbers<[1], [0], [0], [1], [0, 0, 1, 1], [], []>} : vector<32x128xbf16>, vector<128x128xbf16>, vector<32x128xf32> -> vector<32x128xf32>
      %23 = arith.addf %19, %22 : vector<32x128xf32>
      %c0_22 = arith.constant 0 : index
      %c0_23 = arith.constant 0 : index
      %24 = vector.load %arg8[%c0_22, %c0_23] : memref<1x128xf32, #tpu.memory_space<vmem>>, vector<1x128xf32>
      %25 = vector.broadcast %24 : vector<1x128xf32> to vector<32x128xf32>
      %26 = arith.addf %23, %25 : vector<32x128xf32>
      %cst_24 = arith.constant 0.000000e+00 : f32
      %27 = vector.broadcast %cst_24 : f32 to vector<32x128xf32>
      %28 = arith.maximumf %26, %27 : vector<32x128xf32>
      %c32_i32 = arith.constant 32 : i32
      %29 = arith.muli %arg0, %c32_i32 : i32
      %30 = tpu.iota {dimensions = array<i32: 0>} : vector<32x128xi32>
      %31 = vector.broadcast %29 : i32 to vector<32x128xi32>
      %32 = arith.addi %31, %30 : vector<32x128xi32>
      %c32_i32_25 = arith.constant 32 : i32
      %33 = vector.broadcast %c32_i32_25 : i32 to vector<32x128xi32>
      %34 = arith.cmpi slt, %32, %33 : vector<32x128xi32>
      %cst_26 = arith.constant 0.000000e+00 : f32
      %35 = vector.broadcast %cst_26 : f32 to vector<32x128xf32>
      %36 = arith.select %34, %28, %35 : vector<32x128xi1>, vector<32x128xf32>
      %37 = arith.truncf %36 : vector<32x128xf32> to vector<32x128xbf16>
      %c0_27 = arith.constant 0 : index
      %c0_28 = arith.constant 0 : index
      %38 = vector.load %arg9[%c0_27, %c0_28] : memref<32x128xbf16, #tpu.memory_space<vmem>>, vector<32x128xbf16>
      tpu.vector_store %arg9[%c0_27, %c0_28], %37 {strides = array<i32>} : memref<32x128xbf16, #tpu.memory_space<vmem>>, vector<32x128xbf16>,
    } else {
    }
    return
  }
  func.func @transform_0(%arg0: i32, %arg1: i32) -> (i32, i32) {
    %c0_i32 = arith.constant 0 : i32
    return %arg0, %arg1 : i32, i32
  }
  func.func @transform_1(%arg0: i32, %arg1: i32) -> (i32, i32) {
    %c0_i32 = arith.constant 0 : i32
    %c0_i32_0 = arith.constant 0 : i32
    return %arg0, %c0_i32 : i32, i32
  }
  func.func @transform_2(%arg0: i32, %arg1: i32) -> (i32, i32) {
    %c0_i32 = arith.constant 0 : i32
    %c0_i32_0 = arith.constant 0 : i32
    return %arg1, %c0_i32 : i32, i32
  }
  func.func @transform_3(%arg0: i32, %arg1: i32) -> (i32, i32) {
    %c0_i32 = arith.constant 0 : i32
    %c0_i32_0 = arith.constant 0 : i32
    return %arg0, %c0_i32 : i32, i32
  }
  func.func @transform_4(%arg0: i32, %arg1: i32) -> (i32, i32) {
    %c0_i32 = arith.constant 0 : i32
    %c0_i32_0 = arith.constant 0 : i32
    %c0_i32_1 = arith.constant 0 : i32
    return %c0_i32, %c0_i32_0 : i32, i32
  }
  func.func @transform_5(%arg0: i32, %arg1: i32) -> (i32, i32) {
    %c0_i32 = arith.constant 0 : i32
    %c0_i32_0 = arith.constant 0 : i32
    %c0_i32_1 = arith.constant 0 : i32
    return %c0_i32, %c0_i32_0 : i32, i32
  }
  func.func @transform_6(%arg0: i32, %arg1: i32) -> (i32, i32) {
    %c0_i32 = arith.constant 0 : i32
    %c0_i32_0 = arith.constant 0 : i32
    %c0_i32_1 = arith.constant 0 : i32
    return %c0_i32, %c0_i32_0 : i32, i32
  }
  func.func @transform_7(%arg0: i32, %arg1: i32) -> (i32, i32) {
    %c0_i32 = arith.constant 0 : i32
    %c0_i32_0 = arith.constant 0 : i32
    return %arg0, %c0_i32 : i32, i32
  }
}

</mosaic_0001>

<llo_original>
// kernel: tpu_custom_call.1
$region0: #{tpu_custom_call.1}
  #allocation0 [shape = 'u32[]', space=smem, size = 0x4, offset = 0x4, fixed_abs, tag = 'smem constant byte address 0x4 - core index']
  #allocation1 [shape = 'u32[144,128]{1,0:T(1,128)}', space=vmem, size = 0x12000, scoped, tag = 'internal scratch']
  #allocation2 [shape = 'f32[32,128]{1,0:T(8,128)}', space=vmem, size = 0x4000, scoped, tag = 'scratch operand']
  %s0 = inlined_call_operand.vmem [shape: s8[32,128], index: 0, kind: input, shape index: {}]
  %s1 = inlined_call_operand.vmem [shape: f32[32,1], index: 1, kind: input, shape index: {}]
  %s2 = inlined_call_operand.hbm [shape: bf16[128,128], index: 2, kind: input, shape index: {}]
  %s3 = inlined_call_operand.vmem [shape: bf16[32,128], index: 3, kind: input, shape index: {}]
  %s4 = inlined_call_operand.hbm [shape: bf16[128,128], index: 4, kind: input, shape index: {}]
  %s5 = inlined_call_operand.hbm [shape: bf16[128,128], index: 5, kind: input, shape index: {}]
  %s6 = inlined_call_operand.vmem [shape: f32[1,128], index: 6, kind: input, shape index: {}]
  %s7 = inlined_call_operand.hbm [shape: bf16[32,128], index: 7, kind: output, shape index: {}]
  %s8 = sld [smem:[#allocation0]]
  $region58: #{tpu_custom_call.1} parent=0
    _
  %s10 = ssub.s32 1, %s8
  %s11 = scalar_select 0, %s10, %s8
  $region1: #{tpu_custom_call.1} parent=0
    #allocation3 [shape = 'u8[32768]{0}', space=vmem, size = 0x8000, scoped, tag = 'input window, operand 2, single buffered']
    #allocation4 [shape = 's32[1]{0}', space=sflag, size = 0x4, scoped, tag = 'scoped memory for tpu_custom_call.1']
    #allocation5 [shape = 's32[1]{0}', space=sflag, size = 0x4, scoped, tag = 'scoped memory for tpu_custom_call.1']
    #allocation6 [shape = 'u8[32768]{0}', space=vmem, size = 0x8000, scoped, tag = 'input window, operand 4, single buffered']
    #allocation7 [shape = 's32[1]{0}', space=sflag, size = 0x4, scoped, tag = 'scoped memory for tpu_custom_call.1']
    #allocation8 [shape = 'u8[32768]{0}', space=vmem, size = 0x8000, scoped, tag = 'input window, operand 5, single buffered']
    #allocation9 [shape = 'u8[8192]{0}', space=vmem, size = 0x2000, scoped, tag = 'output window, operand 0, single buffered']
    %12 = vsyncpa [#allocation4], 0
    %13 = vsyncpa [#allocation7], 0
    %14 = vsyncpa [#allocation5], 0
    // Predicated region
    $region2: #{tpu_custom_call.1} parent=1 // pred_check
      _
    $region3: #{tpu_custom_call.1} parent=1 // pred_check_branch
      %16 = sbr.rel (0) target = $region5
    $region4: #{tpu_custom_call.1} parent=1 // pred_region
      _
    $region5: #{tpu_custom_call.1} parent=1 // pred_fallthru
      _
    // Predicated region
    $region6: #{tpu_custom_call.1} parent=1 // pred_check
      _
    $region7: #{tpu_custom_call.1} parent=1 // pred_check_branch
      %18 = sbr.rel (0) target = $region9
    $region8: #{tpu_custom_call.1} parent=1 // pred_region
      _
    $region9: #{tpu_custom_call.1} parent=1 // pred_fallthru
      _
    // Predicated region
    $region10: #{tpu_custom_call.1} parent=1 // pred_check
      _
    $region11: #{tpu_custom_call.1} parent=1 // pred_check_branch
      %20 = sbr.rel (0) target = $region13
    $region12: #{tpu_custom_call.1} parent=1 // pred_region
      %s22 = ssub.s32 1024, 1024
      %23 = vsyncadd [#allocation4], %s22
      %s24 = sshll.u32 [#allocation3], 4
      %s25 = int_to_ptr.vmem [resolvable:$true] %s24
      %30 = dma.hbm_to_vmem [thread:$0]  %s2, 1024, %s25, [#allocation4], 64, 64, 4
    $region13: #{tpu_custom_call.1} parent=1 // pred_fallthru
      _
    // Predicated region
    $region14: #{tpu_custom_call.1} parent=1 // pred_check
      _
    $region15: #{tpu_custom_call.1} parent=1 // pred_check_branch
      %32 = sbr.rel (0) target = $region17
    $region16: #{tpu_custom_call.1} parent=1 // pred_region
      _
    $region17: #{tpu_custom_call.1} parent=1 // pred_fallthru
      _
    // Predicated region
    $region18: #{tpu_custom_call.1} parent=1 // pred_check
      _
    $region19: #{tpu_custom_call.1} parent=1 // pred_check_branch
      %34 = sbr.rel (0) target = $region21
    $region20: #{tpu_custom_call.1} parent=1 // pred_region
      %s36 = ssub.s32 1024, 1024
      %37 = vsyncadd [#allocation7], %s36
      %s38 = sshll.u32 [#allocation6], 4
      %s39 = int_to_ptr.vmem [resolvable:$true] %s38
      %44 = dma.hbm_to_vmem [thread:$0]  %s4, 1024, %s39, [#allocation7], 64, 64, 4
    $region21: #{tpu_custom_call.1} parent=1 // pred_fallthru
      _
    // Predicated region
    $region22: #{tpu_custom_call.1} parent=1 // pred_check
      _
    $region23: #{tpu_custom_call.1} parent=1 // pred_check_branch
      %46 = sbr.rel (0) target = $region25
    $region24: #{tpu_custom_call.1} parent=1 // pred_region
      %s48 = ssub.s32 1024, 1024
      %49 = vsyncadd [#allocation7], %s48
      %s50 = sshll.u32 [#allocation8], 4
      %s51 = int_to_ptr.vmem [resolvable:$true] %s50
      %56 = dma.hbm_to_vmem [thread:$0]  %s5, 1024, %s51, [#allocation7], 64, 64, 4
    $region25: #{tpu_custom_call.1} parent=1 // pred_fallthru
      _
    // Predicated region
    $region26: #{tpu_custom_call.1} parent=1 // pred_check
      _
    $region27: #{tpu_custom_call.1} parent=1 // pred_check_branch
      %58 = sbr.rel (0) target = $region29
    $region28: #{tpu_custom_call.1} parent=1 // pred_region
      _
    $region29: #{tpu_custom_call.1} parent=1 // pred_fallthru
      _
    // Predicated region
    $region30: #{tpu_custom_call.1} parent=1 // pred_check
      _
    $region31: #{tpu_custom_call.1} parent=1 // pred_check_branch
      %60 = sbr.rel (0) target = $region33
    $region32: #{tpu_custom_call.1} parent=1 // pred_region
      %61 = dma.done [#allocation4], 1024
    $region33: #{tpu_custom_call.1} parent=1 // pred_fallthru
      _
    // Predicated region
    $region34: #{tpu_custom_call.1} parent=1 // pred_check
      _
    $region35: #{tpu_custom_call.1} parent=1 // pred_check_branch
      %63 = sbr.rel (0) target = $region37
    $region36: #{tpu_custom_call.1} parent=1 // pred_region
      %64 = dma.done [#allocation7], 1024
    $region37: #{tpu_custom_call.1} parent=1 // pred_fallthru
      _
    // Predicated region
    $region38: #{tpu_custom_call.1} parent=1 // pred_check
      _
    $region39: #{tpu_custom_call.1} parent=1 // pred_check_branch
      %66 = sbr.rel (0) target = $region41
    $region40: #{tpu_custom_call.1} parent=1 // pred_region
      %67 = dma.done [#allocation7], 1024
    $region41: #{tpu_custom_call.1} parent=1 // pred_fallthru
      _
    %p69 = scmp.eq.s32.totalorder 0, 0
    // Predicated region
    $region42: #{tpu_custom_call.1} parent=1 // pred_check
      %p70 = pneg %p69
    $region43: #{tpu_custom_call.1} parent=1 // pred_check_branch
      %72 = sbr.rel (%p70) target = $region45
    $region44: #{tpu_custom_call.1} parent=1 // pred_region
      %73 = vst [vmem:[#allocation2] sm:$0xff] 0.0
      %74 = vst [vmem:[#allocation2 + $0x8] sm:$0xff] 0.0
      %75 = vst [vmem:[#allocation2 + $0x10] sm:$0xff] 0.0
      %76 = vst [vmem:[#allocation2 + $0x18] sm:$0xff] 0.0
    $region45: #{tpu_custom_call.1} parent=1 // pred_fallthru
      _
    %v77 = vld [vmem:[#allocation2] sm:$0xff]
    %v78 = vld [vmem:[#allocation2 + $0x8] sm:$0xff]
    %v79 = vld [vmem:[#allocation2 + $0x10] sm:$0xff]
    %v80 = vld [vmem:[#allocation2 + $0x18] sm:$0xff]
    %v81 = vld [vmem:[%s0] sm:$0xff]
    %v82 = vunpack.c.l.s8.bf16 %v81
    %v83 = vunpack.c.h.s8.bf16 %v81
    %v84 = vld [vmem:[#allocation3] sm:$0xf]
    %v85 = vld [vmem:[#allocation3 + $0x4] sm:$0xf]
    %v86 = vld [vmem:[#allocation3 + $0x8] sm:$0xf]
    %v87 = vld [vmem:[#allocation3 + $0xc] sm:$0xf]
    %v88 = vld [vmem:[#allocation3 + $0x10] sm:$0xf]
    %v89 = vld [vmem:[#allocation3 + $0x14] sm:$0xf]
    %v90 = vld [vmem:[#allocation3 + $0x18] sm:$0xf]
    %v91 = vld [vmem:[#allocation3 + $0x1c] sm:$0xf]
    %v92 = vld [vmem:[#allocation3 + $0x20] sm:$0xf]
    %v93 = vld [vmem:[#allocation3 + $0x24] sm:$0xf]
    %v94 = vld [vmem:[#allocation3 + $0x28] sm:$0xf]
    %v95 = vld [vmem:[#allocation3 + $0x2c] sm:$0xf]
    %v96 = vld [vmem:[#allocation3 + $0x30] sm:$0xf]
    %v97 = vld [vmem:[#allocation3 + $0x34] sm:$0xf]
    %v98 = vld [vmem:[#allocation3 + $0x38] sm:$0xf]
    %v99 = vld [vmem:[#allocation3 + $0x3c] sm:$0xf]
    %v116 = vunpack.c.l.b16 %v84
    %v117 = vunpack.c.l.b16 %v85
    %v118 = vunpack.c.l.b16 %v86
    %v119 = vunpack.c.l.b16 %v87
    %v120 = vunpack.c.l.b16 %v88
    %v121 = vunpack.c.l.b16 %v89
    %v122 = vunpack.c.l.b16 %v90
    %v123 = vunpack.c.l.b16 %v91
    %v124 = vunpack.c.l.b16 %v92
    %v125 = vunpack.c.l.b16 %v93
    %v126 = vunpack.c.l.b16 %v94
    %v127 = vunpack.c.l.b16 %v95
    %v128 = vunpack.c.l.b16 %v96
    %v129 = vunpack.c.l.b16 %v97
    %v130 = vunpack.c.l.b16 %v98
    %v131 = vunpack.c.l.b16 %v99
    %v132 = vpack.c.b16 %v117, %v116
    %v133 = vpack.c.b16 %v119, %v118
    %v134 = vpack.c.b16 %v121, %v120
    %v135 = vpack.c.b16 %v123, %v122
    %v136 = vpack.c.b16 %v125, %v124
    %v137 = vpack.c.b16 %v127, %v126
    %v138 = vpack.c.b16 %v129, %v128
    %v139 = vpack.c.b16 %v131, %v130
    %148 = vmatprep.subr.bf16.mxu0 0
    %149 = vmatpush1.bf16.msra.mxu0 %v132
    %150 = vmatprep.subr.bf16.mxu0 0
    %151 = vmatpush1.bf16.msra.mxu0 %v133
    %152 = vmatprep.subr.bf16.mxu0 0
    %153 = vmatpush1.bf16.msra.mxu0 %v134
    %154 = vmatprep.subr.bf16.mxu0 0
    %155 = vmatpush1.bf16.msra.mxu0 %v135
    %156 = vmatprep.subr.bf16.mxu0 0
    %157 = vmatpush1.bf16.msra.mxu0 %v136
    %158 = vmatprep.subr.bf16.mxu0 0
    %159 = vmatpush1.bf16.msra.mxu0 %v137
    %160 = vmatprep.subr.bf16.mxu0 0
    %161 = vmatpush1.bf16.msra.mxu0 %v138
    %162 = vmatprep.subr.bf16.mxu0 0
    %163 = vmatpush1.bf16.msra.mxu0 %v139
    %164 = vmatprep.subr.bf16.mxu0 0
    %165 = vmatpush1.bf16.msra.mxu0 0
    %166 = vmatprep.subr.bf16.mxu0 0
    %167 = vmatpush1.bf16.msra.mxu0 0
    %168 = vmatprep.subr.bf16.mxu0 0
    %169 = vmatpush1.bf16.msra.mxu0 0
    %170 = vmatprep.subr.bf16.mxu0 0
    %171 = vmatpush1.bf16.msra.mxu0 0
    %172 = vmatprep.subr.bf16.mxu0 0
    %173 = vmatpush1.bf16.msra.mxu0 0
    %174 = vmatprep.subr.bf16.mxu0 0
    %175 = vmatpush1.bf16.msra.mxu0 0
    %176 = vmatprep.subr.bf16.mxu0 0
    %177 = vmatpush1.bf16.msra.mxu0 0
    %178 = vmatprep.subr.bf16.mxu0 0
    %179 = vmatpush1.bf16.msra.mxu0 0
    %180 = vmatprep.mubr.bf16.mxu0 0
    %181 = vmatmul.mubr.bf16.gmra.mrb[0].mxu0 %v82
    %v182 = vpop.f32.mrb[0].mxu0
    %v183 = vadd.f32 0.0, %v182
    %v184 = vpop.f32.mrb[0].mxu0
    %v185 = vpop.f32.mrb[0].mxu0
    %v186 = vadd.f32 0.0, %v185
    %v187 = vpop.f32.mrb[0].mxu0
    %188 = vmatprep.mubr.bf16.mxu0 0
    %189 = vmatmul.mubr.bf16.gmra.mrb[0].mxu0 %v83
    %v190 = vpop.f32.mrb[0].mxu0
    %v191 = vadd.f32 0.0, %v190
    %v192 = vpop.f32.mrb[0].mxu0
    %v193 = vpop.f32.mrb[0].mxu0
    %v194 = vadd.f32 0.0, %v193
    %v195 = vpop.f32.mrb[0].mxu0
    %196 = vdwg.mxu0
    %v197 = vadd.f32 %v77, %v183
    %v198 = vadd.f32 %v78, %v186
    %v199 = vadd.f32 %v79, %v191
    %v200 = vadd.f32 %v80, %v194
    %201 = vst [vmem:[#allocation2] sm:$0xff] %v197
    %202 = vst [vmem:[#allocation2 + $0x8] sm:$0xff] %v198
    %203 = vst [vmem:[#allocation2 + $0x10] sm:$0xff] %v199
    %204 = vst [vmem:[#allocation2 + $0x18] sm:$0xff] %v200
    // Predicated region
    $region46: #{tpu_custom_call.1} parent=1 // pred_check
      %p205 = pneg %p69
    $region47: #{tpu_custom_call.1} parent=1 // pred_check_branch
      %207 = sbr.rel (%p205) target = $region49
    $region48: #{tpu_custom_call.1} parent=1 // pred_region
      %v208 = vld [vmem:[#allocation2] sm:$0xff]
      %v209 = vld [vmem:[#allocation2 + $0x8] sm:$0xff]
      %v210 = vld [vmem:[#allocation2 + $0x10] sm:$0xff]
      %v211 = vld [vmem:[#allocation2 + $0x18] sm:$0xff]
      %v212 = vld [vmem:[%s1] sm:$0xff]
      %v213 = vld [vmem:[%s1 + $0x8] sm:$0xff]
      %v214 = vld [vmem:[%s1 + $0x10] sm:$0xff]
      %v215 = vld [vmem:[%s1 + $0x18] sm:$0xff]
      %217 = vset.pattern.permute.xlu0 0
      %218 = vperm.xlu0 %217, %v212
      %v219 = vpop.permute.xlu0 %218
      %222 = vset.pattern.permute.xlu0 0
      %223 = vperm.xlu0 %222, %v213
      %v224 = vpop.permute.xlu0 %223
      %227 = vset.pattern.permute.xlu0 0
      %228 = vperm.xlu0 %227, %v214
      %v229 = vpop.permute.xlu0 %228
      %232 = vset.pattern.permute.xlu0 0
      %233 = vperm.xlu0 %232, %v215
      %v234 = vpop.permute.xlu0 %233
      %v236 = vmul.f32 %v208, %v219
      %v237 = vmul.f32 %v209, %v224
      %v238 = vmul.f32 %v210, %v229
      %v239 = vmul.f32 %v211, %v234
      %v240 = vpack.c.bf16 %v237, %v236
      %v241 = vpack.c.bf16 %v239, %v238
      %v242 = vld [vmem:[#allocation6] sm:$0xf]
      %v243 = vld [vmem:[#allocation6 + $0x4] sm:$0xf]
      %v244 = vld [vmem:[#allocation6 + $0x8] sm:$0xf]
      %v245 = vld [vmem:[#allocation6 + $0xc] sm:$0xf]
      %v246 = vld [vmem:[#allocation6 + $0x10] sm:$0xf]
      %v247 = vld [vmem:[#allocation6 + $0x14] sm:$0xf]
      %v248 = vld [vmem:[#allocation6 + $0x18] sm:$0xf]
      %v249 = vld [vmem:[#allocation6 + $0x1c] sm:$0xf]
      %v250 = vld [vmem:[#allocation6 + $0x20] sm:$0xf]
      %v251 = vld [vmem:[#allocation6 + $0x24] sm:$0xf]
      %v252 = vld [vmem:[#allocation6 + $0x28] sm:$0xf]
      %v253 = vld [vmem:[#allocation6 + $0x2c] sm:$0xf]
      %v254 = vld [vmem:[#allocation6 + $0x30] sm:$0xf]
      %v255 = vld [vmem:[#allocation6 + $0x34] sm:$0xf]
      %v256 = vld [vmem:[#allocation6 + $0x38] sm:$0xf]
      %v257 = vld [vmem:[#allocation6 + $0x3c] sm:$0xf]
      %v258 = vld [vmem:[%s3] sm:$0xf]
      %v259 = vld [vmem:[%s3 + $0x4] sm:$0xf]
      %v260 = vld [vmem:[%s3 + $0x8] sm:$0xf]
      %v261 = vld [vmem:[%s3 + $0xc] sm:$0xf]
      %v262 = vld [vmem:[#allocation8] sm:$0xf]
      %v263 = vld [vmem:[#allocation8 + $0x4] sm:$0xf]
      %v264 = vld [vmem:[#allocation8 + $0x8] sm:$0xf]
      %v265 = vld [vmem:[#allocation8 + $0xc] sm:$0xf]
      %v266 = vld [vmem:[#allocation8 + $0x10] sm:$0xf]
      %v267 = vld [vmem:[#allocation8 + $0x14] sm:$0xf]
      %v268 = vld [vmem:[#allocation8 + $0x18] sm:$0xf]
      %v269 = vld [vmem:[#allocation8 + $0x1c] sm:$0xf]
      %v270 = vld [vmem:[#allocation8 + $0x20] sm:$0xf]
      %v271 = vld [vmem:[#allocation8 + $0x24] sm:$0xf]
      %v272 = vld [vmem:[#allocation8 + $0x28] sm:$0xf]
      %v273 = vld [vmem:[#allocation8 + $0x2c] sm:$0xf]
      %v274 = vld [vmem:[#allocation8 + $0x30] sm:$0xf]
      %v275 = vld [vmem:[#allocation8 + $0x34] sm:$0xf]
      %v276 = vld [vmem:[#allocation8 + $0x38] sm:$0xf]
      %v277 = vld [vmem:[#allocation8 + $0x3c] sm:$0xf]
      %v282 = vunpack.c.l.b16 %v258
      %v283 = vunpack.c.l.b16 %v259
      %v284 = vunpack.c.l.b16 %v260
      %v285 = vunpack.c.l.b16 %v261
      %v286 = vpack.c.b16 %v283, %v282
      %v287 = vpack.c.b16 %v285, %v284
      %v306 = vunpack.c.l.b16 %v262
      %v307 = vunpack.c.l.b16 %v263
      %v308 = vunpack.c.l.b16 %v264
      %v309 = vunpack.c.l.b16 %v265
      %v310 = vunpack.c.l.b16 %v266
      %v311 = vunpack.c.l.b16 %v267
      %v312 = vunpack.c.l.b16 %v268
      %v313 = vunpack.c.l.b16 %v269
      %v314 = vunpack.c.l.b16 %v270
      %v315 = vunpack.c.l.b16 %v271
      %v316 = vunpack.c.l.b16 %v272
      %v317 = vunpack.c.l.b16 %v273
      %v318 = vunpack.c.l.b16 %v274
      %v319 = vunpack.c.l.b16 %v275
      %v320 = vunpack.c.l.b16 %v276
      %v321 = vunpack.c.l.b16 %v277
      %v322 = vpack.c.b16 %v307, %v306
      %v323 = vpack.c.b16 %v309, %v308
      %v324 = vpack.c.b16 %v311, %v310
      %v325 = vpack.c.b16 %v313, %v312
      %v326 = vpack.c.b16 %v315, %v314
      %v327 = vpack.c.b16 %v317, %v316
      %v328 = vpack.c.b16 %v319, %v318
      %v329 = vpack.c.b16 %v321, %v320
      %338 = vmatprep.subr.bf16.mxu0 0
      %339 = vmatpush1.bf16.msra.mxu0 %v322
      %340 = vmatprep.subr.bf16.mxu0 0
      %341 = vmatpush1.bf16.msra.mxu0 %v323
      %342 = vmatprep.subr.bf16.mxu0 0
      %343 = vmatpush1.bf16.msra.mxu0 %v324
      %344 = vmatprep.subr.bf16.mxu0 0
      %345 = vmatpush1.bf16.msra.mxu0 %v325
      %346 = vmatprep.subr.bf16.mxu0 0
      %347 = vmatpush1.bf16.msra.mxu0 %v326
      %348 = vmatprep.subr.bf16.mxu0 0
      %349 = vmatpush1.bf16.msra.mxu0 %v327
      %350 = vmatprep.subr.bf16.mxu0 0
      %351 = vmatpush1.bf16.msra.mxu0 %v328
      %352 = vmatprep.subr.bf16.mxu0 0
      %353 = vmatpush1.bf16.msra.mxu0 %v329
      %354 = vmatprep.subr.bf16.mxu0 0
      %355 = vmatpush1.bf16.msra.mxu0 0
      %356 = vmatprep.subr.bf16.mxu0 0
      %357 = vmatpush1.bf16.msra.mxu0 0
      %358 = vmatprep.subr.bf16.mxu0 0
      %359 = vmatpush1.bf16.msra.mxu0 0
      %360 = vmatprep.subr.bf16.mxu0 0
      %361 = vmatpush1.bf16.msra.mxu0 0
      %362 = vmatprep.subr.bf16.mxu0 0
      %363 = vmatpush1.bf16.msra.mxu0 0
      %364 = vmatprep.subr.bf16.mxu0 0
      %365 = vmatpush1.bf16.msra.mxu0 0
      %366 = vmatprep.subr.bf16.mxu0 0
      %367 = vmatpush1.bf16.msra.mxu0 0
      %368 = vmatprep.subr.bf16.mxu0 0
      %369 = vmatpush1.bf16.msra.mxu0 0
      %370 = vmatprep.mubr.bf16.mxu0 0
      %371 = vmatmul.mubr.bf16.gmra.mrb[0].mxu0 %v286
      %v372 = vpop.f32.mrb[0].mxu0
      %v373 = vadd.f32 0.0, %v372
      %v374 = vpop.f32.mrb[0].mxu0
      %v375 = vpop.f32.mrb[0].mxu0
      %v376 = vadd.f32 0.0, %v375
      %v377 = vpop.f32.mrb[0].mxu0
      %378 = vmatprep.mubr.bf16.mxu0 0
      %379 = vmatmul.mubr.bf16.gmra.mrb[0].mxu0 %v287
      %v380 = vpop.f32.mrb[0].mxu0
      %v381 = vadd.f32 0.0, %v380
      %v382 = vpop.f32.mrb[0].mxu0
      %v383 = vpop.f32.mrb[0].mxu0
      %v384 = vadd.f32 0.0, %v383
      %v385 = vpop.f32.mrb[0].mxu0
      %386 = vdwg.mxu0
      %v403 = vunpack.c.l.b16 %v242
      %v404 = vunpack.c.l.b16 %v243
      %v405 = vunpack.c.l.b16 %v244
      %v406 = vunpack.c.l.b16 %v245
      %v407 = vunpack.c.l.b16 %v246
      %v408 = vunpack.c.l.b16 %v247
      %v409 = vunpack.c.l.b16 %v248
      %v410 = vunpack.c.l.b16 %v249
      %v411 = vunpack.c.l.b16 %v250
      %v412 = vunpack.c.l.b16 %v251
      %v413 = vunpack.c.l.b16 %v252
      %v414 = vunpack.c.l.b16 %v253
      %v415 = vunpack.c.l.b16 %v254
      %v416 = vunpack.c.l.b16 %v255
      %v417 = vunpack.c.l.b16 %v256
      %v418 = vunpack.c.l.b16 %v257
      %v419 = vpack.c.b16 %v404, %v403
      %v420 = vpack.c.b16 %v406, %v405
      %v421 = vpack.c.b16 %v408, %v407
      %v422 = vpack.c.b16 %v410, %v409
      %v423 = vpack.c.b16 %v412, %v411
      %v424 = vpack.c.b16 %v414, %v413
      %v425 = vpack.c.b16 %v416, %v415
      %v426 = vpack.c.b16 %v418, %v417
      %435 = vmatprep.subr.bf16.mxu0 0
      %436 = vmatpush1.bf16.msra.mxu0 %v419
      %437 = vmatprep.subr.bf16.mxu0 0
      %438 = vmatpush1.bf16.msra.mxu0 %v420
      %439 = vmatprep.subr.bf16.mxu0 0
      %440 = vmatpush1.bf16.msra.mxu0 %v421
      %441 = vmatprep.subr.bf16.mxu0 0
      %442 = vmatpush1.bf16.msra.mxu0 %v422
      %443 = vmatprep.subr.bf16.mxu0 0
      %444 = vmatpush1.bf16.msra.mxu0 %v423
      %445 = vmatprep.subr.bf16.mxu0 0
      %446 = vmatpush1.bf16.msra.mxu0 %v424
      %447 = vmatprep.subr.bf16.mxu0 0
      %448 = vmatpush1.bf16.msra.mxu0 %v425
      %449 = vmatprep.subr.bf16.mxu0 0
      %450 = vmatpush1.bf16.msra.mxu0 %v426
      %451 = vmatprep.subr.bf16.mxu0 0
      %452 = vmatpush1.bf16.msra.mxu0 0
      %453 = vmatprep.subr.bf16.mxu0 0
      %454 = vmatpush1.bf16.msra.mxu0 0
      %455 = vmatprep.subr.bf16.mxu0 0
      %456 = vmatpush1.bf16.msra.mxu0 0
      %457 = vmatprep.subr.bf16.mxu0 0
      %458 = vmatpush1.bf16.msra.mxu0 0
      %459 = vmatprep.subr.bf16.mxu0 0
      %460 = vmatpush1.bf16.msra.mxu0 0
      %461 = vmatprep.subr.bf16.mxu0 0
      %462 = vmatpush1.bf16.msra.mxu0 0
      %463 = vmatprep.subr.bf16.mxu0 0
      %464 = vmatpush1.bf16.msra.mxu0 0
      %465 = vmatprep.subr.bf16.mxu0 0
      %466 = vmatpush1.bf16.msra.mxu0 0
      %467 = vmatprep.mubr.bf16.mxu0 0
      %468 = vmatmul.mubr.bf16.gmra.mrb[0].mxu0 %v240
      %v469 = vpop.f32.mrb[0].mxu0
      %v470 = vadd.f32 %v373, %v469
      %v471 = vpop.f32.mrb[0].mxu0
      %v472 = vpop.f32.mrb[0].mxu0
      %v473 = vadd.f32 %v376, %v472
      %v474 = vpop.f32.mrb[0].mxu0
      %475 = vmatprep.mubr.bf16.mxu0 0
      %476 = vmatmul.mubr.bf16.gmra.mrb[0].mxu0 %v241
      %v477 = vpop.f32.mrb[0].mxu0
      %v478 = vadd.f32 %v381, %v477
      %v479 = vpop.f32.mrb[0].mxu0
      %v480 = vpop.f32.mrb[0].mxu0
      %v481 = vadd.f32 %v384, %v480
      %v482 = vpop.f32.mrb[0].mxu0
      %483 = vdwg.mxu0
      %v484 = vld [vmem:[%s6] sm:$0x1]
      %v486 = vlaneseq
      %v487 = vshrl.u32 %v486, 7
      %v488 = vsub.s32 0, %v487
      %v489 = vrot.slane %v484, %v488
      %v491 = vadd.f32 %v470, %v489
      %v492 = vadd.f32 %v473, %v489
      %v493 = vadd.f32 %v478, %v489
      %v494 = vadd.f32 %v481, %v489
      %v495 = vmax.f32 %v491, 0.0
      %v496 = vmax.f32 %v492, 0.0
      %v497 = vmax.f32 %v493, 0.0
      %v498 = vmax.f32 %v494, 0.0
      %s499 = smul.u32 0, 32
      %v500 = vlaneseq
      %v501 = vshrl.u32 %v500, 7
      %v502 = vadd.s32 %v501, 8
      %v503 = vadd.s32 %v501, 16
      %v504 = vadd.s32 %v501, 24
      %v505 = vstv %s499
      %v506 = vadd.s32 %v505, %v501
      %v507 = vadd.s32 %v505, %v502
      %v508 = vadd.s32 %v505, %v503
      %v509 = vadd.s32 %v505, %v504
      %vm510 = vcmp.lt.s32.totalorder %v506, 32
      %vm511 = vcmp.lt.s32.totalorder %v507, 32
      %vm512 = vcmp.lt.s32.totalorder %v508, 32
      %vm513 = vcmp.lt.s32.totalorder %v509, 32
      %v514 = vsel %vm510, %v495, 0.0
      %v515 = vsel %vm511, %v496, 0.0
      %v516 = vsel %vm512, %v497, 0.0
      %v517 = vsel %vm513, %v498, 0.0
      %v518 = vpack.c.bf16 %v515, %v514
      %v519 = vpack.c.bf16 %v517, %v516
      %v522 = vunpack.c.l.b16 %v518
      %v523 = vunpack.c.h.b16 %v518
      %v524 = vunpack.c.l.b16 %v519
      %v525 = vunpack.c.h.b16 %v519
      %v526 = vpack.c.b16 %v522, %v522
      %v527 = vpack.c.b16 %v523, %v523
      %v528 = vpack.c.b16 %v524, %v524
      %v529 = vpack.c.b16 %v525, %v525
      %534 = vst [vmem:[#allocation9] sm:$0xf] %v526
      %535 = vst [vmem:[#allocation9 + $0x4] sm:$0xf] %v527
      %536 = vst [vmem:[#allocation9 + $0x8] sm:$0xf] %v528
      %537 = vst [vmem:[#allocation9 + $0xc] sm:$0xf] %v529
    $region49: #{tpu_custom_call.1} parent=1 // pred_fallthru
      _
    // Predicated region
    $region50: #{tpu_custom_call.1} parent=1 // pred_check
      _
    $region51: #{tpu_custom_call.1} parent=1 // pred_check_branch
      %539 = sbr.rel (0) target = $region53
    $region52: #{tpu_custom_call.1} parent=1 // pred_region
      %s541 = ssub.s32 256, 256
      %542 = vsyncadd [#allocation5], %s541
      %s543 = sshll.u32 [#allocation9], 4
      %s544 = int_to_ptr.vmem [resolvable:$true] %s543
      %549 = dma.vmem_to_hbm [thread:$0]  %s544, 256, %s7, [#allocation5], 64, 64, 4
    $region53: #{tpu_custom_call.1} parent=1 // pred_fallthru
      _
    // Predicated region
    $region54: #{tpu_custom_call.1} parent=1 // pred_check
      _
    $region55: #{tpu_custom_call.1} parent=1 // pred_check_branch
      %551 = sbr.rel (0) target = $region57
    $region56: #{tpu_custom_call.1} parent=1 // pred_region
      %552 = dma.done [#allocation5], 256
    $region57: #{tpu_custom_call.1} parent=1 // pred_fallthru
      _
    %553 = vsyncpa [#allocation4], 1
    %554 = vsyncpa [#allocation7], 1
    %555 = vsyncpa [#allocation5], 1

</llo_original>
